<compile_context>
chip_gen: v6e
topology: v6e:2x2x1
jax: 0.10.0
libtpu: 0.0.40
codegen_flags: <defaults>
</compile_context>

<pallas_src>
import math

import jax
import jax.numpy as jnp
from jax.experimental import pallas as pl
from jax.experimental.pallas import tpu as pltpu

GROUPS = 4


def _adapter_kernel(x_ref, wdm_t_ref, wu_ref, bu_ref, o_ref):
    # x_ref: (TILE_HW, C) slab of the NHWC input (HW on sublanes, C on lanes).
    x = x_ref[...]

    # adapter_down_3 ∘ adapter_mid_3 (fused block-diagonal weight):
    #   (TILE_HW, C) @ (C, 8) -> (TILE_HW, 8)
    y = jnp.dot(x, wdm_t_ref[...], preferred_element_type=jnp.float32)

    # dropout(p=0.1): identity at inference.
    # TODO(synk): training-mode stochastic dropout (pltpu.prng_*) not implemented.

    # adapter_up_3: contract W_up (C, 8) with y (TILE_HW, 8) over the 8-wide
    # bottleneck (trans-B matmul) -> (C, TILE_HW).  Only this tiny intermediate
    # ever crosses layouts; the big feature tiles stay in their natural layout.
    up = jax.lax.dot_general(
        wu_ref[...], y,
        dimension_numbers=(((1,), (1,)), ((), ())),
        preferred_element_type=jnp.float32)

    o_ref[...] = (up + bu_ref[...]).astype(o_ref.dtype)   # lane-dense (C, TILE_HW) store


def _block_diag(w2d, groups):
    """Grouped 1x1-conv weight (Cout, Cin//groups) -> dense block-diagonal (Cout, Cin)."""
    cout, cig = w2d.shape
    cog = cout // groups
    blocks = w2d.reshape(groups, cog, cig)                       # (G, cog, cig)
    eye = jnp.eye(groups, dtype=w2d.dtype)
    dense = jnp.einsum('goi,gh->gohi', blocks, eye)              # (G, cog, G, cig)
    return dense.reshape(cout, groups * cig)


def _round_up(a, b):
    return (a + b - 1) // b * b


def _pick_tile_hw(hw, c, itemsize, feature_budget=24 << 20, max_tile=4096):
    """Largest multiple-of-128 HW tile whose double-buffered in+out tiles fit the budget."""
    cap = feature_budget // (4 * c * itemsize)     # 2 tensors x 2 pipeline buffers
    cap = max(128, (cap // 128) * 128)
    t = min(max_tile, cap, _round_up(hw, 128))
    return max(128, (t // 128) * 128)


def bi_direct_adapter_3(x, params, groups=GROUPS):
    """x: (B, D1, D2, C) channels-last, C == input_size (divisible by groups)."""
    B, D1, D2, C = x.shape
    assert C % groups == 0, "input_size must be divisible by groups"
    HW = D1 * D2
    out_dtype = x.dtype
    itemsize = jnp.dtype(jnp.float32).itemsize

    # Free reshape only (no wrapper-side transpose pass): NHWC, spatial flattened.
    x_flat = x.reshape(B, HW, C)

    # HW tiling (lane-dense, VMEM-budgeted); pad ragged HW with zeros, slice later.
    tile_hw = _pick_tile_hw(HW, C, itemsize)
    hw_pad = _round_up(HW, tile_hw)
    if hw_pad != HW:
        x_flat = jnp.pad(x_flat, ((0, 0), (0, hw_pad - HW), (0, 0)))

    # Dense block-diagonal weights for the grouped 1x1 convs; fuse down∘mid and
    # fold every bias into one effective up-bias (exact: dropout is identity at eval).
    wd = _block_diag(params['w_down'][:, :, 0, 0].astype(jnp.float32), groups)  # (8, C)
    wm = _block_diag(params['w_mid'][:, :, 0, 0].astype(jnp.float32), groups)   # (8, 8)
    wu = _block_diag(params['w_up'][:, :, 0, 0].astype(jnp.float32), groups)    # (C, 8)
    bd = params['b_down'].astype(jnp.float32)
    bm = params['b_mid'].astype(jnp.float32)
    bu = params['b_up'].astype(jnp.float32)

    wdm_t = (wm @ wd).T                                        # (C, 8)  right-multiply form
    bu_eff = (wu @ (wm @ bd + bm) + bu).reshape(C, 1)          # (C, 1)

    grid = (B, hw_pad // tile_hw)

    grid_spec = pltpu.PrefetchScalarGridSpec(
        num_scalar_prefetch=0,
        grid=grid,
        in_specs=[
            pl.BlockSpec((None, tile_hw, C), lambda b, t: (b, t, 0)),  # features (batch squeezed)
            pl.BlockSpec(wdm_t.shape, lambda b, t: (0, 0)),            # fused down+mid weight
            pl.BlockSpec(wu.shape, lambda b, t: (0, 0)),               # up weight
            pl.BlockSpec(bu_eff.shape, lambda b, t: (0, 0)),           # fused bias
        ],
        out_specs=pl.BlockSpec((None, C, tile_hw), lambda b, t: (b, 0, t)),
    )

    tile_bytes = tile_hw * C * itemsize
    vmem_limit = int(min(100 << 20, max(
        16 << 20,
        4 * tile_bytes                     # in + out feature tiles, double-buffered
        + 6 * C * 128 * itemsize           # lane-padded weight/bias blocks (x2 buffers)
        + 2 * tile_hw * 128 * itemsize     # skinny (TILE_HW, 8) bottleneck temporaries
        + (4 << 20))))                     # headroom

    cost = pl.CostEstimate(
        flops=int(2 * B * hw_pad * (C * 8 + 8 * C)),
        transcendentals=0,
        bytes_accessed=int(2 * B * hw_pad * C * itemsize
                           + (wdm_t.size + wu.size + bu_eff.size) * itemsize),
    )

    out_nchw = pl.pallas_call(
        _adapter_kernel,
        out_shape=jax.ShapeDtypeStruct((B, C, hw_pad), out_dtype),
        grid_spec=grid_spec,
        compiler_params=pltpu.CompilerParams(
            dimension_semantics=("parallel", "parallel"),
            vmem_limit_bytes=vmem_limit),
        cost_estimate=cost,
    )(x_flat, wdm_t, wu, bu_eff)

    if hw_pad != HW:
        out_nchw = out_nchw[:, :, :HW]

    # torch .view(B, D1, D2, C): raw reinterpretation of the NCHW buffer.
    return out_nchw.reshape(B, D1, D2, C)


def reference_forward(x, params, groups=GROUPS):
    """Pure-JAX mirror of the PyTorch Bi_direct_adapter_3.forward (eval mode)."""
    B, D1, D2, C = x.shape
    xn = jnp.transpose(x, (0, 3, 1, 2))                        # permute(0,3,1,2)

    def grouped_conv1x1(h, w, b):
        cin, cout = h.shape[1], w.shape[0]
        cig, cog = cin // groups, cout // groups
        outs = []
        for g in range(groups):
            hg = h[:, g * cig:(g + 1) * cig]
            wg = w[g * cog:(g + 1) * cog, :, 0, 0]
            outs.append(jnp.einsum('oi,bihw->bohw', wg, hg))
        return jnp.concatenate(outs, axis=1) + b[None, :, None, None]

    y = grouped_conv1x1(xn, params['w_down'], params['b_down'])
    y = grouped_conv1x1(y, params['w_mid'], params['b_mid'])
    # dropout: identity in eval mode
    y = grouped_conv1x1(y, params['w_up'], params['b_up'])
    return y.reshape(B, D1, D2, C)                             # torch .view(B, D1, D2, C)


def init_params(key, C, groups=GROUPS):
    # NOTE: the PyTorch module zero-initialises every adapter weight/bias, which
    # makes the forward output identically zero.  We use non-trivial random
    # parameters (as a trained adapter would have) so the numerical check is
    # meaningful; the zero-init case is verified separately in __main__.
    cig = C // groups
    keys = jax.random.split(key, 6)

    def u(k, shape, fan_in):
        bound = 1.0 / math.sqrt(fan_in)
        return jax.random.uniform(k, shape, jnp.float32, -bound, bound)

    return dict(
        w_down=u(keys[0], (8, cig, 1, 1), cig), b_down=u(keys[1], (8,), cig),
        w_mid=u(keys[2], (8, 2, 1, 1), 2),      b_mid=u(keys[3], (8,), 2),
        w_up=u(keys[4], (C, 2, 1, 1), 2),       b_up=u(keys[5], (C,), 2),
    )


if __name__ == "__main__":
    # Small shapes consistent with the module: channels-last input (B, D1, D2, C),
    # C = input_size divisible by groups=4; D1*D2 = 256 keeps lanes dense.
    B, D1, D2, C = 2, 16, 16, 32

    key = jax.random.PRNGKey(0)
    kx, kp = jax.random.split(key)
    x = jax.random.normal(kx, (B, D1, D2, C), jnp.float32)
    params = init_params(kp, C)

    out = jax.block_until_ready(bi_direct_adapter_3(x, params))
    ref = reference_forward(x, params)
    assert out.shape == (B, D1, D2, C), out.shape
    max_err = float(jnp.max(jnp.abs(out - ref)))
    assert max_err < 1e-4, f"max abs err {max_err}"

    # The module's actual zero-initialisation must give an all-zero output.
    zero_params = jax.tree_util.tree_map(jnp.zeros_like, params)
    out0 = jax.block_until_ready(bi_direct_adapter_3(x, zero_params))
    assert float(jnp.max(jnp.abs(out0))) == 0.0

    # Ragged spatial size (HW = 14*14 = 196, not a multiple of 128) exercises the
    # zero-padding / slice-off path while keeping lane-dense stores.
    x2 = jax.random.normal(jax.random.PRNGKey(1), (1, 14, 14, C), jnp.float32)
    out2 = jax.block_until_ready(bi_direct_adapter_3(x2, params))
    ref2 = reference_forward(x2, params)
    assert float(jnp.max(jnp.abs(out2 - ref2))) < 1e-4

    print("KERNEL_OK")
</pallas_src>

<mosaic_0001>
module attributes {stable_mosaic.version = 11 : i64} {
  func.func @_adapter_kernel(%arg0: i32, %arg1: i32, %arg2: memref<1x256x32xf32, #tpu.memory_space<vmem>>, %arg3: memref<32x8xf32, #tpu.memory_space<vmem>>, %arg4: memref<32x8xf32, #tpu.memory_space<vmem>>, %arg5: memref<32x1xf32, #tpu.memory_space<vmem>>, %arg6: memref<1x32x256xf32, #tpu.memory_space<vmem>>) attributes {dimension_semantics = [#tpu.dimension_semantics<parallel>, #tpu.dimension_semantics<parallel>], iteration_bounds = array<i64: 2, 1>, scalar_prefetch = 0 : i64, scratch_operands = 0 : i64, tpu.core_type = #tpu.core_type<tc>, window_params = [{transform_indices = @transform_0, window_bounds = array<i64: 1, 256, 32>}, {pipeline_mode = #tpu.pipeline_mode<synchronous>, transform_indices = @transform_1, window_bounds = array<i64: 32, 8>}, {pipeline_mode = #tpu.pipeline_mode<synchronous>, transform_indices = @transform_2, window_bounds = array<i64: 32, 8>}, {pipeline_mode = #tpu.pipeline_mode<synchronous>, transform_indices = @transform_3, window_bounds = array<i64: 32, 1>}, {transform_indices = @transform_4, window_bounds = array<i64: 1, 32, 256>}]} {
    %c0 = arith.constant 0 : index
    %c0_0 = arith.constant 0 : index
    %c0_1 = arith.constant 0 : index
    %0 = vector.load %arg2[%c0, %c0_0, %c0_1] : memref<1x256x32xf32, #tpu.memory_space<vmem>>, vector<1x256x32xf32>
    %1 = vector.shape_cast %0 : vector<1x256x32xf32> to vector<256x32xf32>
    %c0_2 = arith.constant 0 : index
    %c0_3 = arith.constant 0 : index
    %2 = vector.load %arg3[%c0_2, %c0_3] : memref<32x8xf32, #tpu.memory_space<vmem>>, vector<32x8xf32>
    %cst = arith.constant dense<0.000000e+00> : vector<256x8xf32>
    %3 = tpu.matmul %1, %2, %cst {dimension_numbers = #tpu.dot_dimension_numbers<[1], [0], [0], [1], [0, 0, 1, 1], [], []>} : vector<256x32xf32>, vector<32x8xf32>, vector<256x8xf32> -> vector<256x8xf32>
    %c0_4 = arith.constant 0 : index
    %c0_5 = arith.constant 0 : index
    %4 = vector.load %arg4[%c0_4, %c0_5] : memref<32x8xf32, #tpu.memory_space<vmem>>, vector<32x8xf32>
    %cst_6 = arith.constant dense<0.000000e+00> : vector<32x256xf32>
    %5 = tpu.matmul %4, %3, %cst_6 {dimension_numbers = #tpu.dot_dimension_numbers<[1], [1], [0], [0], [0, 0, 1, 0], [], []>} : vector<32x8xf32>, vector<256x8xf32>, vector<32x256xf32> -> vector<32x256xf32>
    %c0_7 = arith.constant 0 : index
    %c0_8 = arith.constant 0 : index
    %6 = vector.load %arg5[%c0_7, %c0_8] : memref<32x1xf32, #tpu.memory_space<vmem>>, vector<32x1xf32>
    %7 = vector.broadcast %6 : vector<32x1xf32> to vector<32x256xf32>
    %8 = arith.addf %5, %7 : vector<32x256xf32>
    %c0_9 = arith.constant 0 : index
    %c0_10 = arith.constant 0 : index
    %c0_11 = arith.constant 0 : index
    %9 = vector.load %arg6[%c0_9, %c0_10, %c0_11] : memref<1x32x256xf32, #tpu.memory_space<vmem>>, vector<1x32x256xf32>
    %10 = vector.shape_cast %9 : vector<1x32x256xf32> to vector<32x256xf32>
    %11 = vector.shape_cast %8 : vector<32x256xf32> to vector<1x32x256xf32>
    tpu.vector_store %arg6[%c0_9, %c0_10, %c0_11], %11 {strides = array<i32>} : memref<1x32x256xf32, #tpu.memory_space<vmem>>, vector<1x32x256xf32>,
    return
  }
  func.func @transform_0(%arg0: i32, %arg1: i32) -> (i32, i32, i32) {
    %c0_i32 = arith.constant 0 : i32
    %c0_i32_0 = arith.constant 0 : i32
    return %arg0, %arg1, %c0_i32 : i32, i32, i32
  }
  func.func @transform_1(%arg0: i32, %arg1: i32) -> (i32, i32) {
    %c0_i32 = arith.constant 0 : i32
    %c0_i32_0 = arith.constant 0 : i32
    %c0_i32_1 = arith.constant 0 : i32
    return %c0_i32, %c0_i32_0 : i32, i32
  }
  func.func @transform_2(%arg0: i32, %arg1: i32) -> (i32, i32) {
    %c0_i32 = arith.constant 0 : i32
    %c0_i32_0 = arith.constant 0 : i32
    %c0_i32_1 = arith.constant 0 : i32
    return %c0_i32, %c0_i32_0 : i32, i32
  }
  func.func @transform_3(%arg0: i32, %arg1: i32) -> (i32, i32) {
    %c0_i32 = arith.constant 0 : i32
    %c0_i32_0 = arith.constant 0 : i32
    %c0_i32_1 = arith.constant 0 : i32
    return %c0_i32, %c0_i32_0 : i32, i32
  }
  func.func @transform_4(%arg0: i32, %arg1: i32) -> (i32, i32, i32) {
    %c0_i32 = arith.constant 0 : i32
    %c0_i32_0 = arith.constant 0 : i32
    return %arg0, %c0_i32, %arg1 : i32, i32, i32
  }
}

</mosaic_0001>

<llo_original>
// kernel: tpu_custom_call.1
$region0: #{tpu_custom_call.1}
  #allocation0 [shape = 'u32[]', space=smem, size = 0x4, offset = 0x4, fixed_abs, tag = 'smem constant byte address 0x4 - core index']
  #allocation1 [shape = 'u32[144,128]{1,0:T(1,128)}', space=vmem, size = 0x12000, scoped, tag = 'internal scratch']
  %s0 = inlined_call_operand.vmem [shape: f32[2,256,32], index: 0, kind: input, shape index: {}]
  %s1 = inlined_call_operand.vmem [shape: f32[32,8], index: 1, kind: input, shape index: {}]
  %s2 = inlined_call_operand.vmem [shape: f32[32,8], index: 2, kind: input, shape index: {}]
  %s3 = inlined_call_operand.vmem [shape: f32[32,1], index: 3, kind: input, shape index: {}]
  %s4 = inlined_call_operand.hbm [shape: f32[2,32,256], index: 4, kind: output, shape index: {}]
  %s5 = sld [smem:[#allocation0]]
  $region49: #{tpu_custom_call.1} parent=0
    _
  %s7 = ssub.s32 1, %s5
  %s8 = scalar_select 0, %s7, %s5
  $region1: #{tpu_custom_call.1} parent=0
    #allocation2 [shape = 'u8[65536]{0}', space=vmem, size = 0x10000, scoped, tag = 'output window, operand 0']
    #allocation3 [shape = 's32[2]{0}', space=sflag, size = 0x8, scoped, tag = 'scoped memory for tpu_custom_call.1']
    %9 = vsyncpa [#allocation3], 0
    %s10 = scalar_lea.sflag [#allocation3], 1
    %11 = vsyncpa %s10, 0
    loop: start=0, step=1, limit=4
    $region2: #{tpu_custom_call.1} parent=1 // loop_pre_header
      _
    $region3: #{tpu_custom_call.1} parent=1 // loop_header
      %s13 = sphi 0, %s17
      %p14 = scmp.ge.s32.totalorder %s13, 4
      %s20 = sphi 0, %s32
      %s21 = sphi 0, %s28
      %s22 = sphi 0, %s20
      %s23 = sphi 0, %s21
      %s24 = sphi 0, %s22
      %s25 = sphi 0, %s23
      %s37 = sphi 0, %s39
      %s40 = sphi 0, %s37
      %s41 = sphi 0, %s40
      %s57 = sphi 0, %s41
      %s61 = sphi 0, %s61
      %s63 = sphi 0, %s61
      %s64 = sphi 0, %s63
      %s78 = sphi 0, %s64
      %s82 = sphi 0, %s82
      %s84 = sphi 0, %s82
      %s85 = sphi 0, %s84
      %s99 = sphi 0, %s85
      %s103 = sphi 0, %s103
      %s105 = sphi 0, %s103
      %s106 = sphi 0, %s105
      %s120 = sphi 0, %s106
      %s128 = sphi 0, %s130
      %s131 = sphi 0, %s128
      %s132 = sphi 0, %s131
      %s148 = sphi 0, %s132
    $region4: #{tpu_custom_call.1} parent=1 // loop_header_branch
      %16 = sbr.rel (%p14) target = $region8
    $region5: #{tpu_custom_call.1} parent=1 // loop_body
      %s18 = ssub.s32 %s13, 1
      %s19 = ssub.s32 %s13, 2
      %s26 = sadd.s32 1, %s21
      %p27 = scmp.ge.s32.totalorder %s26, 1
      %s28 = scalar_select %p27, 0, %s26
      %s29 = sadd.s32 1, %s20
      %s30 = scalar_select %p27, %s29, %s20
      %p31 = scmp.ge.s32.totalorder %s30, 2
      %s32 = scalar_select %p31, 0, %s30
      %s33 = ssub.s32 %s20, %s32
      %s34 = ssub.s32 %s21, %s28
      %s35 = sor.u32 %s33, %s34
      %p36 = scmp.eq.s32.totalorder %s35, 0
      %s38 = sadd.s32 %s37, 1
      %s39 = scalar_select %p36, %s37, %s38
      %p42 = pneg %p36
      %p43 = scmp.eq.s32.totalorder %s13, 1
      %p44 = por %p42, %p43
      %p45 = scmp.ne.s32.totalorder %s37, %s40
      %p46 = scmp.eq.s32.totalorder %s13, 0
      %p47 = por %p45, %p46
      %p48 = scmp.ne.s32.totalorder %s37, %s40
      %p49 = scmp.eq.s32.totalorder %s18, 1
      %p50 = por %p48, %p49
      %p51 = scmp.ne.s32.totalorder %s40, %s41
      %p52 = scmp.eq.s32.totalorder %s18, 0
      %p53 = por %p51, %p52
      %p54 = scmp.ne.s32.totalorder %s40, %s41
      %p55 = scmp.eq.s32.totalorder %s19, 1
      %p56 = por %p54, %p55
      %p58 = scmp.ne.s32.totalorder %s41, %s57
      %p59 = scmp.eq.s32.totalorder %s19, 0
      %p60 = por %p58, %p59
      %s62 = sadd.s32 %s61, 1
      %p65 = scmp.eq.s32.totalorder %s13, 1
      %p66 = scmp.ne.s32.totalorder %s61, %s63
      %p67 = scmp.eq.s32.totalorder %s13, 0
      %p68 = por %p66, %p67
      %p69 = scmp.ne.s32.totalorder %s61, %s63
      %p70 = scmp.eq.s32.totalorder %s18, 1
      %p71 = por %p69, %p70
      %p72 = scmp.ne.s32.totalorder %s63, %s64
      %p73 = scmp.eq.s32.totalorder %s18, 0
      %p74 = por %p72, %p73
      %p75 = scmp.ne.s32.totalorder %s63, %s64
      %p76 = scmp.eq.s32.totalorder %s19, 1
      %p77 = por %p75, %p76
      %p79 = scmp.ne.s32.totalorder %s64, %s78
      %p80 = scmp.eq.s32.totalorder %s19, 0
      %p81 = por %p79, %p80
      %s83 = sadd.s32 %s82, 1
      %p86 = scmp.eq.s32.totalorder %s13, 1
      %p87 = scmp.ne.s32.totalorder %s82, %s84
      %p88 = scmp.eq.s32.totalorder %s13, 0
      %p89 = por %p87, %p88
      %p90 = scmp.ne.s32.totalorder %s82, %s84
      %p91 = scmp.eq.s32.totalorder %s18, 1
      %p92 = por %p90, %p91
      %p93 = scmp.ne.s32.totalorder %s84, %s85
      %p94 = scmp.eq.s32.totalorder %s18, 0
      %p95 = por %p93, %p94
      %p96 = scmp.ne.s32.totalorder %s84, %s85
      %p97 = scmp.eq.s32.totalorder %s19, 1
      %p98 = por %p96, %p97
      %p100 = scmp.ne.s32.totalorder %s85, %s99
      %p101 = scmp.eq.s32.totalorder %s19, 0
      %p102 = por %p100, %p101
      %s104 = sadd.s32 %s103, 1
      %p107 = scmp.eq.s32.totalorder %s13, 1
      %p108 = scmp.ne.s32.totalorder %s103, %s105
      %p109 = scmp.eq.s32.totalorder %s13, 0
      %p110 = por %p108, %p109
      %p111 = scmp.ne.s32.totalorder %s103, %s105
      %p112 = scmp.eq.s32.totalorder %s18, 1
      %p113 = por %p111, %p112
      %p114 = scmp.ne.s32.totalorder %s105, %s106
      %p115 = scmp.eq.s32.totalorder %s18, 0
      %p116 = por %p114, %p115
      %p117 = scmp.ne.s32.totalorder %s105, %s106
      %p118 = scmp.eq.s32.totalorder %s19, 1
      %p119 = por %p117, %p118
      %p121 = scmp.ne.s32.totalorder %s106, %s120
      %p122 = scmp.eq.s32.totalorder %s19, 0
      %p123 = por %p121, %p122
      %s124 = ssub.s32 %s20, %s32
      %s125 = ssub.s32 %s21, %s28
      %s126 = sor.u32 %s124, %s125
      %p127 = scmp.eq.s32.totalorder %s126, 0
      %s129 = sadd.s32 %s128, 1
      %s130 = scalar_select %p127, %s128, %s129
      %p133 = pneg %p127
      %p134 = scmp.eq.s32.totalorder %s13, 1
      %p135 = por %p133, %p134
      %p136 = scmp.ne.s32.totalorder %s128, %s131
      %p137 = scmp.eq.s32.totalorder %s13, 0
      %p138 = por %p136, %p137
      %p139 = scmp.ne.s32.totalorder %s128, %s131
      %p140 = scmp.eq.s32.totalorder %s18, 1
      %p141 = por %p139, %p140
      %p142 = scmp.ne.s32.totalorder %s131, %s132
      %p143 = scmp.eq.s32.totalorder %s18, 0
      %p144 = por %p142, %p143
      %p145 = scmp.ne.s32.totalorder %s131, %s132
      %p146 = scmp.eq.s32.totalorder %s19, 1
      %p147 = por %p145, %p146
      %p149 = scmp.ne.s32.totalorder %s132, %s148
      %p150 = scmp.eq.s32.totalorder %s19, 0
      %p151 = por %p149, %p150
      %p152 = scmp.le.s32.totalorder 1, %s13
      %p153 = scmp.lt.s32.totalorder %s13, 3
      %p154 = pnand %p152, %p153
      %p155 = pneg %p154
      // Predicated region
      $region9: #{tpu_custom_call.1} parent=5 // pred_check
        _
      $region10: #{tpu_custom_call.1} parent=5 // pred_check_branch
        %157 = sbr.rel (%p154) target = $region12
      $region11: #{tpu_custom_call.1} parent=5 // pred_region
        %s158 = ssub.s32 %s13, 1
        // Predicated region
        $region13: #{tpu_custom_call.1} parent=11 // pred_check
          %p159 = pneg %p74
        $region14: #{tpu_custom_call.1} parent=11 // pred_check_branch
          %161 = sbr.rel (%p159) target = $region16
        $region15: #{tpu_custom_call.1} parent=11 // pred_region
          _
        $region16: #{tpu_custom_call.1} parent=11 // pred_fallthru
          _
        // Predicated region
        $region17: #{tpu_custom_call.1} parent=11 // pred_check
          %p162 = pneg %p95
        $region18: #{tpu_custom_call.1} parent=11 // pred_check_branch
          %164 = sbr.rel (%p162) target = $region20
        $region19: #{tpu_custom_call.1} parent=11 // pred_region
          _
        $region20: #{tpu_custom_call.1} parent=11 // pred_fallthru
          _
        // Predicated region
        $region21: #{tpu_custom_call.1} parent=11 // pred_check
          %p165 = pneg %p116
        $region22: #{tpu_custom_call.1} parent=11 // pred_check_branch
          %167 = sbr.rel (%p165) target = $region24
        $region23: #{tpu_custom_call.1} parent=11 // pred_region
          _
        $region24: #{tpu_custom_call.1} parent=11 // pred_fallthru
          _
      $region12: #{tpu_custom_call.1} parent=5 // pred_fallthru
        _
      %p168 = scmp.lt.s32.totalorder %s13, 2
      // Predicated region
      $region25: #{tpu_custom_call.1} parent=5 // pred_check
        %p169 = pneg %p168
      $region26: #{tpu_custom_call.1} parent=5 // pred_check_branch
        %171 = sbr.rel (%p169) target = $region28
      $region27: #{tpu_custom_call.1} parent=5 // pred_region
        // Predicated region
        $region29: #{tpu_custom_call.1} parent=27 // pred_check
          %p172 = pneg %p47
        $region30: #{tpu_custom_call.1} parent=27 // pred_check_branch
          %174 = sbr.rel (%p172) target = $region32
        $region31: #{tpu_custom_call.1} parent=27 // pred_region
          %s175 = smul.u32 32, %s21
          %p176 = scmp.lt.s32.totalorder %s20, 1
          %s177 = scalar_select %p176, %s20, 1
          %p178 = scmp.lt.s32.totalorder %s175, 31
          %s179 = scalar_select %p178, %s175, 31
          %s180 = smul.addr %s177, 32
          %s181 = sadd.s32 %s179, %s180
          %s182 = smul.addr %s181, 8
          %s183 = scalar_lea.vmem %s0, %s182
          %s184 = smul.u32 32, %s21
        $region32: #{tpu_custom_call.1} parent=27 // pred_fallthru
          _
      $region28: #{tpu_custom_call.1} parent=5 // pred_fallthru
        _
      %p185 = scmp.le.s32.totalorder 1, %s13
      %p186 = scmp.lt.s32.totalorder %s13, 3
      %p187 = pnand %p185, %p186
      %p188 = pneg %p187
      // Predicated region
      $region33: #{tpu_custom_call.1} parent=5 // pred_check
        _
      $region34: #{tpu_custom_call.1} parent=5 // pred_check_branch
        %190 = sbr.rel (%p187) target = $region36
      $region35: #{tpu_custom_call.1} parent=5 // pred_region
        %s191 = ssub.s32 %s13, 1
        %s192 = smul.u32 32, %s23
        %p193 = scmp.lt.s32.totalorder %s22, 1
        %s194 = scalar_select %p193, %s22, 1
        %p195 = scmp.lt.s32.totalorder %s192, 31
        %s196 = scalar_select %p195, %s192, 31
        %s197 = smul.addr %s194, 32
        %s198 = sadd.s32 %s196, %s197
        %s199 = smul.addr %s198, 8
        %s200 = scalar_lea.vmem %s0, %s199
        %p201 = pneg %p53
        %p202 = pneg %p50
        %p203 = pneg %p74
        %p204 = pneg %p71
        %p205 = pneg %p95
        %p206 = pneg %p92
        %p207 = pneg %p116
        %p208 = pneg %p113
        %p209 = pneg %p144
        %p210 = pneg %p141
        %s211 = sand.u32 %s131, 1
        %s212 = scalar_lea.sflag [#allocation3], %s211
        %s213 = sand.u32 %s131, 1
        %s214 = smul.addr %s213, 64
        %s215 = scalar_lea.vmem [#allocation2], %s214
        %s216 = smul.u32 32, %s23
        %p217 = scmp.lt.s32.totalorder %s22, 1
        %s218 = scalar_select %p217, %s22, 1
        %p219 = scmp.lt.s32.totalorder %s216, 31
        %s220 = scalar_select %p219, %s216, 31
        %s221 = smul.addr %s218, 32
        %s222 = sadd.s32 %s220, %s221
        %s223 = smul.addr %s222, 8
        %s224 = scalar_lea.vmem %s0, %s223
        %s225 = smul.u32 32, %s23
        %s226 = smul.u32 2, %s23
        %v227 = vld [vmem:[%s224] sm:$0xff]
        %v228 = vld [vmem:[%s224 + $0x8] sm:$0xff]
        %v229 = vld [vmem:[%s224 + $0x10] sm:$0xff]
        %v230 = vld [vmem:[%s224 + $0x18] sm:$0xff]
        %v231 = vld [vmem:[%s224 + $0x20] sm:$0xff]
        %v232 = vld [vmem:[%s224 + $0x28] sm:$0xff]
        %v233 = vld [vmem:[%s224 + $0x30] sm:$0xff]
        %v234 = vld [vmem:[%s224 + $0x38] sm:$0xff]
        %v235 = vld [vmem:[%s224 + $0x40] sm:$0xff]
        %v236 = vld [vmem:[%s224 + $0x48] sm:$0xff]
        %v237 = vld [vmem:[%s224 + $0x50] sm:$0xff]
        %v238 = vld [vmem:[%s224 + $0x58] sm:$0xff]
        %v239 = vld [vmem:[%s224 + $0x60] sm:$0xff]
        %v240 = vld [vmem:[%s224 + $0x68] sm:$0xff]
        %v241 = vld [vmem:[%s224 + $0x70] sm:$0xff]
        %v242 = vld [vmem:[%s224 + $0x78] sm:$0xff]
        %v243 = vld [vmem:[%s224 + $0x80] sm:$0xff]
        %v244 = vld [vmem:[%s224 + $0x88] sm:$0xff]
        %v245 = vld [vmem:[%s224 + $0x90] sm:$0xff]
        %v246 = vld [vmem:[%s224 + $0x98] sm:$0xff]
        %v247 = vld [vmem:[%s224 + $0xa0] sm:$0xff]
        %v248 = vld [vmem:[%s224 + $0xa8] sm:$0xff]
        %v249 = vld [vmem:[%s224 + $0xb0] sm:$0xff]
        %v250 = vld [vmem:[%s224 + $0xb8] sm:$0xff]
        %v251 = vld [vmem:[%s224 + $0xc0] sm:$0xff]
        %v252 = vld [vmem:[%s224 + $0xc8] sm:$0xff]
        %v253 = vld [vmem:[%s224 + $0xd0] sm:$0xff]
        %v254 = vld [vmem:[%s224 + $0xd8] sm:$0xff]
        %v255 = vld [vmem:[%s224 + $0xe0] sm:$0xff]
        %v256 = vld [vmem:[%s224 + $0xe8] sm:$0xff]
        %v257 = vld [vmem:[%s224 + $0xf0] sm:$0xff]
        %v258 = vld [vmem:[%s224 + $0xf8] sm:$0xff]
        %v259 = vld [vmem:[%s1] sm:$0xff]
        %v260 = vld [vmem:[%s1 + $0x8] sm:$0xff]
        %v261 = vld [vmem:[%s1 + $0x10] sm:$0xff]
        %v262 = vld [vmem:[%s1 + $0x18] sm:$0xff]
        %vm263 = vcmask 261120
        %v265 = vsel %vm263, %v227, 0
        %v268 = vsel %vm263, %v228, 0
        %v271 = vsel %vm263, %v229, 0
        %v274 = vsel %vm263, %v230, 0
        %v277 = vsel %vm263, %v231, 0
        %v280 = vsel %vm263, %v232, 0
        %v283 = vsel %vm263, %v233, 0
        %v286 = vsel %vm263, %v234, 0
        %v289 = vsel %vm263, %v235, 0
        %v292 = vsel %vm263, %v236, 0
        %v295 = vsel %vm263, %v237, 0
        %v298 = vsel %vm263, %v238, 0
        %v301 = vsel %vm263, %v239, 0
        %v304 = vsel %vm263, %v240, 0
        %v307 = vsel %vm263, %v241, 0
        %v310 = vsel %vm263, %v242, 0
        %v313 = vsel %vm263, %v243, 0
        %v316 = vsel %vm263, %v244, 0
        %v319 = vsel %vm263, %v245, 0
        %v322 = vsel %vm263, %v246, 0
        %v325 = vsel %vm263, %v247, 0
        %v328 = vsel %vm263, %v248, 0
        %v331 = vsel %vm263, %v249, 0
        %v334 = vsel %vm263, %v250, 0
        %v337 = vsel %vm263, %v251, 0
        %v340 = vsel %vm263, %v252, 0
        %v343 = vsel %vm263, %v253, 0
        %v346 = vsel %vm263, %v254, 0
        %v349 = vsel %vm263, %v255, 0
        %v352 = vsel %vm263, %v256, 0
        %v355 = vsel %vm263, %v257, 0
        %v358 = vsel %vm263, %v258, 0
        %360 = vmatprep.subr.mxu0 0.0
        %361 = vmatpush1.msra.mxu0 0.0
        %362 = vmatprep.subr.mxu0 0.0
        %363 = vmatpush1.msra.mxu0 0.0
        %364 = vmatprep.subr.mxu0 0.0
        %365 = vmatpush1.msra.mxu0 0.0
        %366 = vmatprep.subr.mxu0 0.0
        %367 = vmatpush1.msra.mxu0 0.0
        %368 = vmatprep.subr.mxu0 0.0
        %369 = vmatpush1.msra.mxu0 0.0
        %370 = vmatprep.subr.mxu0 0.0
        %371 = vmatpush1.msra.mxu0 0.0
        %372 = vmatprep.subr.mxu0 0.0
        %373 = vmatpush1.msra.mxu0 0.0
        %374 = vmatprep.subr.mxu0 0.0
        %375 = vmatpush1.msra.mxu0 0.0
        %376 = vmatprep.subr.mxu0 0.0
        %377 = vmatpush1.msra.mxu0 0.0
        %378 = vmatprep.subr.mxu0 0.0
        %379 = vmatpush1.msra.mxu0 0.0
        %380 = vmatprep.subr.mxu0 0.0
        %381 = vmatpush1.msra.mxu0 0.0
        %382 = vmatprep.subr.mxu0 0.0
        %383 = vmatpush1.msra.mxu0 0.0
        %384 = vmatprep.subr.mxu0 0.0
        %385 = vmatpush1.msra.mxu0 %v262
        %386 = vmatprep.subr.mxu0 0.0
        %387 = vmatpush1.msra.mxu0 %v261
        %388 = vmatprep.subr.mxu0 0.0
        %389 = vmatpush1.msra.mxu0 %v260
        %390 = vmatprep.subr.mxu0 0.0
        %391 = vmatpush1.msra.mxu0 %v259
        %392 = vmatprep.subr.mxu0 0.0
        %393 = vmatpush2.msra.mxu0 0.0
        %394 = vmatprep.subr.mxu0 0.0
        %395 = vmatpush2.msra.mxu0 0.0
        %396 = vmatprep.subr.mxu0 0.0
        %397 = vmatpush2.msra.mxu0 0.0
        %398 = vmatprep.subr.mxu0 0.0
        %399 = vmatpush2.msra.mxu0 0.0
        %400 = vmatprep.subr.mxu0 0.0
        %401 = vmatpush2.msra.mxu0 0.0
        %402 = vmatprep.subr.mxu0 0.0
        %403 = vmatpush2.msra.mxu0 0.0
        %404 = vmatprep.subr.mxu0 0.0
        %405 = vmatpush2.msra.mxu0 0.0
        %406 = vmatprep.subr.mxu0 0.0
        %407 = vmatpush2.msra.mxu0 0.0
        %408 = vmatprep.subr.mxu0 0.0
        %409 = vmatpush2.msra.mxu0 0.0
        %410 = vmatprep.subr.mxu0 0.0
        %411 = vmatpush2.msra.mxu0 0.0
        %412 = vmatprep.subr.mxu0 0.0
        %413 = vmatpush2.msra.mxu0 0.0
        %414 = vmatprep.subr.mxu0 0.0
        %415 = vmatpush2.msra.mxu0 0.0
        %416 = vmatprep.subr.mxu0 0.0
        %417 = vmatpush2.msra.mxu0 0.0
        %418 = vmatprep.subr.mxu0 0.0
        %419 = vmatpush2.msra.mxu0 0.0
        %420 = vmatprep.subr.mxu0 0.0
        %421 = vmatpush2.msra.mxu0 0.0
        %422 = vmatprep.subr.mxu0 0.0
        %423 = vmatpush2.msra.mxu0 0.0
        %424 = vmatprep.mubr.f32.mxu0 0.0
        %425 = vmatmul.mubr.f32.gmra.mxu0 %v265
        %v426 = vpop.f32.mrf.mxu0
        %v427 = vadd.f32 0.0, %v426
        %v428 = vpop.f32.mrf.mxu0
        %429 = vmatprep.mubr.f32.mxu0 0.0
        %430 = vmatmul.mubr.f32.gmra.mxu0 %v268
        %v431 = vpop.f32.mrf.mxu0
        %v432 = vadd.f32 0.0, %v431
        %v433 = vpop.f32.mrf.mxu0
        %434 = vmatprep.mubr.f32.mxu0 0.0
        %435 = vmatmul.mubr.f32.gmra.mxu0 %v271
        %v436 = vpop.f32.mrf.mxu0
        %v437 = vadd.f32 0.0, %v436
        %v438 = vpop.f32.mrf.mxu0
        %439 = vmatprep.mubr.f32.mxu0 0.0
        %440 = vmatmul.mubr.f32.gmra.mxu0 %v274
        %v441 = vpop.f32.mrf.mxu0
        %v442 = vadd.f32 0.0, %v441
        %v443 = vpop.f32.mrf.mxu0
        %444 = vmatprep.mubr.f32.mxu0 0.0
        %445 = vmatmul.mubr.f32.gmra.mxu0 %v277
        %v446 = vpop.f32.mrf.mxu0
        %v447 = vadd.f32 0.0, %v446
        %v448 = vpop.f32.mrf.mxu0
        %449 = vmatprep.mubr.f32.mxu0 0.0
        %450 = vmatmul.mubr.f32.gmra.mxu0 %v280
        %v451 = vpop.f32.mrf.mxu0
        %v452 = vadd.f32 0.0, %v451
        %v453 = vpop.f32.mrf.mxu0
        %454 = vmatprep.mubr.f32.mxu0 0.0
        %455 = vmatmul.mubr.f32.gmra.mxu0 %v283
        %v456 = vpop.f32.mrf.mxu0
        %v457 = vadd.f32 0.0, %v456
        %v458 = vpop.f32.mrf.mxu0
        %459 = vmatprep.mubr.f32.mxu0 0.0
        %460 = vmatmul.mubr.f32.gmra.mxu0 %v286
        %v461 = vpop.f32.mrf.mxu0
        %v462 = vadd.f32 0.0, %v461
        %v463 = vpop.f32.mrf.mxu0
        %464 = vmatprep.mubr.f32.mxu0 0.0
        %465 = vmatmul.mubr.f32.gmra.mxu0 %v289
        %v466 = vpop.f32.mrf.mxu0
        %v467 = vadd.f32 0.0, %v466
        %v468 = vpop.f32.mrf.mxu0
        %469 = vmatprep.mubr.f32.mxu0 0.0
        %470 = vmatmul.mubr.f32.gmra.mxu0 %v292
        %v471 = vpop.f32.mrf.mxu0
        %v472 = vadd.f32 0.0, %v471
        %v473 = vpop.f32.mrf.mxu0
        %474 = vmatprep.mubr.f32.mxu0 0.0
        %475 = vmatmul.mubr.f32.gmra.mxu0 %v295
        %v476 = vpop.f32.mrf.mxu0
        %v477 = vadd.f32 0.0, %v476
        %v478 = vpop.f32.mrf.mxu0
        %479 = vmatprep.mubr.f32.mxu0 0.0
        %480 = vmatmul.mubr.f32.gmra.mxu0 %v298
        %v481 = vpop.f32.mrf.mxu0
        %v482 = vadd.f32 0.0, %v481
        %v483 = vpop.f32.mrf.mxu0
        %484 = vmatprep.mubr.f32.mxu0 0.0
        %485 = vmatmul.mubr.f32.gmra.mxu0 %v301
        %v486 = vpop.f32.mrf.mxu0
        %v487 = vadd.f32 0.0, %v486
        %v488 = vpop.f32.mrf.mxu0
        %489 = vmatprep.mubr.f32.mxu0 0.0
        %490 = vmatmul.mubr.f32.gmra.mxu0 %v304
        %v491 = vpop.f32.mrf.mxu0
        %v492 = vadd.f32 0.0, %v491
        %v493 = vpop.f32.mrf.mxu0
        %494 = vmatprep.mubr.f32.mxu0 0.0
        %495 = vmatmul.mubr.f32.gmra.mxu0 %v307
        %v496 = vpop.f32.mrf.mxu0
        %v497 = vadd.f32 0.0, %v496
        %v498 = vpop.f32.mrf.mxu0
        %499 = vmatprep.mubr.f32.mxu0 0.0
        %500 = vmatmul.mubr.f32.gmra.mxu0 %v310
        %v501 = vpop.f32.mrf.mxu0
        %v502 = vadd.f32 0.0, %v501
        %v503 = vpop.f32.mrf.mxu0
        %504 = vmatprep.mubr.f32.mxu0 0.0
        %505 = vmatmul.mubr.f32.gmra.mxu0 %v313
        %v506 = vpop.f32.mrf.mxu0
        %v507 = vadd.f32 0.0, %v506
        %v508 = vpop.f32.mrf.mxu0
        %509 = vmatprep.mubr.f32.mxu0 0.0
        %510 = vmatmul.mubr.f32.gmra.mxu0 %v316
        %v511 = vpop.f32.mrf.mxu0
        %v512 = vadd.f32 0.0, %v511
        %v513 = vpop.f32.mrf.mxu0
        %514 = vmatprep.mubr.f32.mxu0 0.0
        %515 = vmatmul.mubr.f32.gmra.mxu0 %v319
        %v516 = vpop.f32.mrf.mxu0
        %v517 = vadd.f32 0.0, %v516
        %v518 = vpop.f32.mrf.mxu0
        %519 = vmatprep.mubr.f32.mxu0 0.0
        %520 = vmatmul.mubr.f32.gmra.mxu0 %v322
        %v521 = vpop.f32.mrf.mxu0
        %v522 = vadd.f32 0.0, %v521
        %v523 = vpop.f32.mrf.mxu0
        %524 = vmatprep.mubr.f32.mxu0 0.0
        %525 = vmatmul.mubr.f32.gmra.mxu0 %v325
        %v526 = vpop.f32.mrf.mxu0
        %v527 = vadd.f32 0.0, %v526
        %v528 = vpop.f32.mrf.mxu0
        %529 = vmatprep.mubr.f32.mxu0 0.0
        %530 = vmatmul.mubr.f32.gmra.mxu0 %v328
        %v531 = vpop.f32.mrf.mxu0
        %v532 = vadd.f32 0.0, %v531
        %v533 = vpop.f32.mrf.mxu0
        %534 = vmatprep.mubr.f32.mxu0 0.0
        %535 = vmatmul.mubr.f32.gmra.mxu0 %v331
        %v536 = vpop.f32.mrf.mxu0
        %v537 = vadd.f32 0.0, %v536
        %v538 = vpop.f32.mrf.mxu0
        %539 = vmatprep.mubr.f32.mxu0 0.0
        %540 = vmatmul.mubr.f32.gmra.mxu0 %v334
        %v541 = vpop.f32.mrf.mxu0
        %v542 = vadd.f32 0.0, %v541
        %v543 = vpop.f32.mrf.mxu0
        %544 = vmatprep.mubr.f32.mxu0 0.0
        %545 = vmatmul.mubr.f32.gmra.mxu0 %v337
        %v546 = vpop.f32.mrf.mxu0
        %v547 = vadd.f32 0.0, %v546
        %v548 = vpop.f32.mrf.mxu0
        %549 = vmatprep.mubr.f32.mxu0 0.0
        %550 = vmatmul.mubr.f32.gmra.mxu0 %v340
        %v551 = vpop.f32.mrf.mxu0
        %v552 = vadd.f32 0.0, %v551
        %v553 = vpop.f32.mrf.mxu0
        %554 = vmatprep.mubr.f32.mxu0 0.0
        %555 = vmatmul.mubr.f32.gmra.mxu0 %v343
        %v556 = vpop.f32.mrf.mxu0
        %v557 = vadd.f32 0.0, %v556
        %v558 = vpop.f32.mrf.mxu0
        %559 = vmatprep.mubr.f32.mxu0 0.0
        %560 = vmatmul.mubr.f32.gmra.mxu0 %v346
        %v561 = vpop.f32.mrf.mxu0
        %v562 = vadd.f32 0.0, %v561
        %v563 = vpop.f32.mrf.mxu0
        %564 = vmatprep.mubr.f32.mxu0 0.0
        %565 = vmatmul.mubr.f32.gmra.mxu0 %v349
        %v566 = vpop.f32.mrf.mxu0
        %v567 = vadd.f32 0.0, %v566
        %v568 = vpop.f32.mrf.mxu0
        %569 = vmatprep.mubr.f32.mxu0 0.0
        %570 = vmatmul.mubr.f32.gmra.mxu0 %v352
        %v571 = vpop.f32.mrf.mxu0
        %v572 = vadd.f32 0.0, %v571
        %v573 = vpop.f32.mrf.mxu0
        %574 = vmatprep.mubr.f32.mxu0 0.0
        %575 = vmatmul.mubr.f32.gmra.mxu0 %v355
        %v576 = vpop.f32.mrf.mxu0
        %v577 = vadd.f32 0.0, %v576
        %v578 = vpop.f32.mrf.mxu0
        %579 = vmatprep.mubr.f32.mxu0 0.0
        %580 = vmatmul.mubr.f32.gmra.mxu0 %v358
        %v581 = vpop.f32.mrf.mxu0
        %v582 = vadd.f32 0.0, %v581
        %v583 = vpop.f32.mrf.mxu0
        %584 = vdwg.mxu0
        %v585 = vld [vmem:[%s2] sm:$0xff]
        %v586 = vld [vmem:[%s2 + $0x8] sm:$0xff]
        %v587 = vld [vmem:[%s2 + $0x10] sm:$0xff]
        %v588 = vld [vmem:[%s2 + $0x18] sm:$0xff]
        %v589 = vld [vmem:[%s3] sm:$0xff]
        %v590 = vld [vmem:[%s3 + $0x8] sm:$0xff]
        %v591 = vld [vmem:[%s3 + $0x10] sm:$0xff]
        %v592 = vld [vmem:[%s3 + $0x18] sm:$0xff]
        %594 = vset.pattern.permute.xlu0 0
        %595 = vperm.xlu0 %594, %v589
        %v596 = vpop.permute.xlu0 %595
        %599 = vset.pattern.permute.xlu0 0
        %600 = vperm.xlu0 %599, %v590
        %v601 = vpop.permute.xlu0 %600
        %604 = vset.pattern.permute.xlu0 0
        %605 = vperm.xlu0 %604, %v591
        %v606 = vpop.permute.xlu0 %605
        %609 = vset.pattern.permute.xlu0 0
        %610 = vperm.xlu0 %609, %v592
        %v611 = vpop.permute.xlu0 %610
        %vm613 = vcmask 64512
        %v615 = vsel %vm613, %v585, 0
        %v618 = vsel %vm613, %v586, 0
        %v621 = vsel %vm613, %v587, 0
        %v624 = vsel %vm613, %v588, 0
        %v627 = vsel %vm613, %v427, 0
        %v630 = vsel %vm613, %v432, 0
        %v633 = vsel %vm613, %v437, 0
        %v636 = vsel %vm613, %v442, 0
        %v639 = vsel %vm613, %v447, 0
        %v642 = vsel %vm613, %v452, 0
        %v645 = vsel %vm613, %v457, 0
        %v648 = vsel %vm613, %v462, 0
        %v651 = vsel %vm613, %v467, 0
        %v654 = vsel %vm613, %v472, 0
        %v657 = vsel %vm613, %v477, 0
        %v660 = vsel %vm613, %v482, 0
        %v663 = vsel %vm613, %v487, 0
        %v666 = vsel %vm613, %v492, 0
        %v669 = vsel %vm613, %v497, 0
        %v672 = vsel %vm613, %v502, 0
        %v675 = vsel %vm613, %v507, 0
        %v678 = vsel %vm613, %v512, 0
        %v681 = vsel %vm613, %v517, 0
        %v684 = vsel %vm613, %v522, 0
        %v687 = vsel %vm613, %v527, 0
        %v690 = vsel %vm613, %v532, 0
        %v693 = vsel %vm613, %v537, 0
        %v696 = vsel %vm613, %v542, 0
        %v699 = vsel %vm613, %v547, 0
        %v702 = vsel %vm613, %v552, 0
        %v705 = vsel %vm613, %v557, 0
        %v708 = vsel %vm613, %v562, 0
        %v711 = vsel %vm613, %v567, 0
        %v714 = vsel %vm613, %v572, 0
        %v717 = vsel %vm613, %v577, 0
        %v720 = vsel %vm613, %v582, 0
        %722 = vmatprep.subr.mxu0 0.0
        %723 = vmatpush1.xpose.msra.mxu0 %v672
        %724 = vmatprep.subr.mxu0 0.0
        %725 = vmatpush1.xpose.msra.mxu0 %v669
        %726 = vmatprep.subr.mxu0 0.0
        %727 = vmatpush1.xpose.msra.mxu0 %v666
        %728 = vmatprep.subr.mxu0 0.0
        %729 = vmatpush1.xpose.msra.mxu0 %v663
        %730 = vmatprep.subr.mxu0 0.0
        %731 = vmatpush1.xpose.msra.mxu0 %v660
        %732 = vmatprep.subr.mxu0 0.0
        %733 = vmatpush1.xpose.msra.mxu0 %v657
        %734 = vmatprep.subr.mxu0 0.0
        %735 = vmatpush1.xpose.msra.mxu0 %v654
        %736 = vmatprep.subr.mxu0 0.0
        %737 = vmatpush1.xpose.msra.mxu0 %v651
        %738 = vmatprep.subr.mxu0 0.0
        %739 = vmatpush1.xpose.msra.mxu0 %v648
        %740 = vmatprep.subr.mxu0 0.0
        %741 = vmatpush1.xpose.msra.mxu0 %v645
        %742 = vmatprep.subr.mxu0 0.0
        %743 = vmatpush1.xpose.msra.mxu0 %v642
        %744 = vmatprep.subr.mxu0 0.0
        %745 = vmatpush1.xpose.msra.mxu0 %v639
        %746 = vmatprep.subr.mxu0 0.0
        %747 = vmatpush1.xpose.msra.mxu0 %v636
        %748 = vmatprep.subr.mxu0 0.0
        %749 = vmatpush1.xpose.msra.mxu0 %v633
        %750 = vmatprep.subr.mxu0 0.0
        %751 = vmatpush1.xpose.msra.mxu0 %v630
        %752 = vmatprep.subr.mxu0 0.0
        %753 = vmatpush1.xpose.msra.mxu0 %v627
        %754 = vmatprep.subr.mxu0 0.0
        %755 = vmatpush2.xpose.msra.mxu0 %v720
        %756 = vmatprep.subr.mxu0 0.0
        %757 = vmatpush2.xpose.msra.mxu0 %v717
        %758 = vmatprep.subr.mxu0 0.0
        %759 = vmatpush2.xpose.msra.mxu0 %v714
        %760 = vmatprep.subr.mxu0 0.0
        %761 = vmatpush2.xpose.msra.mxu0 %v711
        %762 = vmatprep.subr.mxu0 0.0
        %763 = vmatpush2.xpose.msra.mxu0 %v708
        %764 = vmatprep.subr.mxu0 0.0
        %765 = vmatpush2.xpose.msra.mxu0 %v705
        %766 = vmatprep.subr.mxu0 0.0
        %767 = vmatpush2.xpose.msra.mxu0 %v702
        %768 = vmatprep.subr.mxu0 0.0
        %769 = vmatpush2.xpose.msra.mxu0 %v699
        %770 = vmatprep.subr.mxu0 0.0
        %771 = vmatpush2.xpose.msra.mxu0 %v696
        %772 = vmatprep.subr.mxu0 0.0
        %773 = vmatpush2.xpose.msra.mxu0 %v693
        %774 = vmatprep.subr.mxu0 0.0
        %775 = vmatpush2.xpose.msra.mxu0 %v690
        %776 = vmatprep.subr.mxu0 0.0
        %777 = vmatpush2.xpose.msra.mxu0 %v687
        %778 = vmatprep.subr.mxu0 0.0
        %779 = vmatpush2.xpose.msra.mxu0 %v684
        %780 = vmatprep.subr.mxu0 0.0
        %781 = vmatpush2.xpose.msra.mxu0 %v681
        %782 = vmatprep.subr.mxu0 0.0
        %783 = vmatpush2.xpose.msra.mxu0 %v678
        %784 = vmatprep.subr.mxu0 0.0
        %785 = vmatpush2.xpose.msra.mxu0 %v675
        %786 = vmatprep.mubr.f32.mxu0 0.0
        %787 = vmatmul.mubr.f32.gmra.mxu0 %v615
        %v788 = vpop.f32.mrf.mxu0
        %v789 = vadd.f32 %v596, %v788
        %v790 = vpop.f32.mrf.mxu0
        %v791 = vadd.f32 %v596, %v790
        %792 = vmatprep.mubr.f32.mxu0 0.0
        %793 = vmatmul.mubr.f32.gmra.mxu0 %v618
        %v794 = vpop.f32.mrf.mxu0
        %v795 = vadd.f32 %v601, %v794
        %v796 = vpop.f32.mrf.mxu0
        %v797 = vadd.f32 %v601, %v796
        %798 = vmatprep.mubr.f32.mxu0 0.0
        %799 = vmatmul.mubr.f32.gmra.mxu0 %v621
        %v800 = vpop.f32.mrf.mxu0
        %v801 = vadd.f32 %v606, %v800
        %v802 = vpop.f32.mrf.mxu0
        %v803 = vadd.f32 %v606, %v802
        %804 = vmatprep.mubr.f32.mxu0 0.0
        %805 = vmatmul.mubr.f32.gmra.mxu0 %v624
        %v806 = vpop.f32.mrf.mxu0
        %v807 = vadd.f32 %v611, %v806
        %v808 = vpop.f32.mrf.mxu0
        %v809 = vadd.f32 %v611, %v808
        %810 = vdwg.mxu0
        %811 = vst [vmem:[%s215] sm:$0xff] %v789
        %812 = vst [vmem:[%s215 + $0x8] sm:$0xff] %v791
        %813 = vst [vmem:[%s215 + $0x10] sm:$0xff] %v795
        %814 = vst [vmem:[%s215 + $0x18] sm:$0xff] %v797
        %815 = vst [vmem:[%s215 + $0x20] sm:$0xff] %v801
        %816 = vst [vmem:[%s215 + $0x28] sm:$0xff] %v803
        %817 = vst [vmem:[%s215 + $0x30] sm:$0xff] %v807
        %818 = vst [vmem:[%s215 + $0x38] sm:$0xff] %v809
        %s819 = sand.u32 %s131, 1
        %s820 = scalar_lea.sflag [#allocation3], %s819
        %s821 = sand.u32 %s131, 1
        %s822 = smul.addr %s821, 64
        %s823 = scalar_lea.vmem [#allocation2], %s822
        // Predicated region
        $region37: #{tpu_custom_call.1} parent=35 // pred_check
          %p824 = pneg %p141
        $region38: #{tpu_custom_call.1} parent=35 // pred_check_branch
          %826 = sbr.rel (%p824) target = $region40
        $region39: #{tpu_custom_call.1} parent=35 // pred_region
          %s827 = smul.u32 2, %s23
          %s829 = ssub.s32 1024, 1024
          %830 = vsyncadd %s820, %s829
          %s831 = smul.addr %s22, 8
          %s832 = sadd.s32 %s827, %s831
          %s833 = smul.addr %s832, 128
          %s834 = scalar_lea.hbm %s4, %s833
          %s835 = sshll.u32 %s823, 4
          %s836 = int_to_ptr.vmem [resolvable:$true] %s835
          %841 = dma.vmem_to_hbm [thread:$0]  %s836, 1024, %s834, %s820, 256, 256, 16
        $region40: #{tpu_custom_call.1} parent=35 // pred_fallthru
          _
      $region36: #{tpu_custom_call.1} parent=5 // pred_fallthru
        _
      %p842 = scmp.le.s32.totalorder 2, %s13
      // Predicated region
      $region41: #{tpu_custom_call.1} parent=5 // pred_check
        %p843 = pneg %p842
      $region42: #{tpu_custom_call.1} parent=5 // pred_check_branch
        %845 = sbr.rel (%p843) target = $region44
      $region43: #{tpu_custom_call.1} parent=5 // pred_region
        %s846 = ssub.s32 %s13, 2
        // Predicated region
        $region45: #{tpu_custom_call.1} parent=43 // pred_check
          %p847 = pneg %p147
        $region46: #{tpu_custom_call.1} parent=43 // pred_check_branch
          %849 = sbr.rel (%p847) target = $region48
        $region47: #{tpu_custom_call.1} parent=43 // pred_region
          %s850 = sand.u32 %s132, 1
          %s851 = scalar_lea.sflag [#allocation3], %s850
          %s852 = sand.u32 %s132, 1
          %s853 = smul.addr %s852, 64
          %s854 = scalar_lea.vmem [#allocation2], %s853
          %855 = dma.done %s851, 1024
        $region48: #{tpu_custom_call.1} parent=43 // pred_fallthru
          _
      $region44: #{tpu_custom_call.1} parent=5 // pred_fallthru
        _
    $region6: #{tpu_custom_call.1} parent=1 // loop_footer
      %s17 = sadd.s32 1, %s13
    $region7: #{tpu_custom_call.1} parent=1 // loop_footer_branch
      %12 = sbr.rel target = $region3
    $region8: #{tpu_custom_call.1} parent=1 // loop_exit
      _
    %856 = vsyncpa [#allocation3], 1
    %s857 = scalar_lea.sflag [#allocation3], 1
    %858 = vsyncpa %s857, 1

</llo_original>
